<compile_context>
chip_gen: v6e
topology: v6e:2x2x1
jax: 0.10.0
libtpu: 0.0.40
codegen_flags: <defaults>
</compile_context>

<pallas_src>
import jax
import jax.numpy as jnp
from jax import lax
from jax.experimental import pallas as pl
from jax.experimental.pallas import tpu as pltpu


# ---------------------------------------------------------------------------
# Fused kernel: conv(valid, stride 1) + bias + 2x2 max-pool + BatchNorm + ReLU
# ---------------------------------------------------------------------------
def _make_downconv_kernel(N, k, Ho, Hp, Wp, WpC, eps):
    def kernel(x_ref, w_ref, b_ref, g_ref, bt_ref, p_ref, o_ref, conv_ref):
        # x_ref:    (N, H, W*Cin)        bf16 lane-folded input slab
        # w_ref:    (k, W*Cin, 2*Wp*Cout) bf16 fused weights (dw in lane halves)
        # b_ref/g_ref/bt_ref: (1, Wp*Cout) f32 bias/gamma/beta tiled per column
        # p_ref:    (Wp*Cout, Wp*Cout)   f32 0/1 channel sum+broadcast matrix
        # o_ref:    (N, Hp, Wp*Cout)     f32 normalized output
        # conv_ref: (Ho, 2*Wp*Cout)      f32 scratch (pre-pool conv rows)
        pooled = []
        s1 = jnp.zeros((1, WpC), jnp.float32)
        s2 = jnp.zeros((1, WpC), jnp.float32)
        for n in range(N):                      # tiny static batch -> unrolled
            acc = jnp.zeros((Ho, 2 * WpC), jnp.float32)
            for kh in range(k):                 # k fat MXU matmuls per image
                acc = acc + jnp.dot(x_ref[n, pl.ds(kh, Ho), :], w_ref[kh],
                                    preferred_element_type=jnp.float32)
            conv_ref[...] = acc
            # 2x2 max pool: H direction via two strided sublane reads,
            # W direction via a max over the two dw lane halves.
            hmax = jnp.maximum(conv_ref[pl.ds(0, Hp, 2), :],
                               conv_ref[pl.ds(1, Hp, 2), :])
            pn = jnp.maximum(hmax[:, :WpC], hmax[:, WpC:]) + b_ref[...]
            pooled.append(pn)
            s1 = s1 + jnp.sum(pn, axis=0, keepdims=True)
            s2 = s2 + jnp.sum(pn * pn, axis=0, keepdims=True)

        # BatchNorm finalize (training-mode batch stats, biased variance).
        # Columns are (wp, cout) pairs; p_ref sums each channel over its Wp
        # lane group and broadcasts the result back to every column.
        cnt = jnp.float32(N * Hp * Wp)
        mean = jnp.dot(s1, p_ref[...], preferred_element_type=jnp.float32) / cnt
        msq = jnp.dot(s2, p_ref[...], preferred_element_type=jnp.float32) / cnt
        var = jnp.maximum(msq - mean * mean, 0.0)
        scale = g_ref[...] * lax.rsqrt(var + eps)
        shift = bt_ref[...] - mean * scale
        for n in range(N):
            o_ref[n] = jnp.maximum(pooled[n] * scale + shift, 0.0)

    return kernel


# ---------------------------------------------------------------------------
# DownConv forward
# ---------------------------------------------------------------------------
@jax.jit
def downconv_forward(x_nchw, w_hwio, bias, gamma, beta):
    eps = 1e-5
    N, Cin, H, W = x_nchw.shape
    k, _, _, Cout = w_hwio.shape
    Ho, Wo = H - k + 1, W - k + 1          # Conv2d stride=1, no padding
    Hp, Wp = Ho // 2, Wo // 2              # MaxPool2d(2): kernel 2, stride 2, floor
    WCin, WpC = W * Cin, Wp * Cout

    # NCHW -> lane-folded (N, H, W*Cin) slab; bf16 MXU operands, f32 accumulate.
    x = jnp.transpose(x_nchw, (0, 2, 3, 1)).reshape(N, H, WCin)
    x = x.astype(jnp.bfloat16)

    # Fused weight: fold the kw-sum, the input->output column map and the
    # W-pooling parity dw into one (W*Cin, 2*Wp*Cout) matrix per kh.
    wcol = jnp.arange(W)[:, None, None]
    wpc = jnp.arange(Wp)[None, :, None]
    kwi = jnp.arange(k)[None, None, :]
    sel = jnp.stack([(wcol == 2 * wpc + dw + kwi).astype(jnp.float32)
                     for dw in range(2)])                        # (2, W, Wp, k)
    w2 = jnp.einsum("dwpk,hkco->hwcdpo", sel, w_hwio.astype(jnp.float32))
    w2 = w2.reshape(k, WCin, 2 * WpC).astype(jnp.bfloat16)

    bias_col = jnp.tile(bias.astype(jnp.float32), Wp).reshape(1, WpC)
    gamma_col = jnp.tile(gamma.astype(jnp.float32), Wp).reshape(1, WpC)
    beta_col = jnp.tile(beta.astype(jnp.float32), Wp).reshape(1, WpC)
    cols = jnp.arange(WpC)
    chan_pool = (cols[:, None] % Cout == cols[None, :] % Cout).astype(jnp.float32)

    vmem = pl.BlockSpec(memory_space=pltpu.MemorySpace.VMEM)
    out = pl.pallas_call(
        _make_downconv_kernel(N, k, Ho, Hp, Wp, WpC, eps),
        out_shape=jax.ShapeDtypeStruct((N, Hp, WpC), jnp.float32),
        in_specs=[vmem] * 6,
        out_specs=vmem,
        scratch_shapes=[pltpu.VMEM((Ho, 2 * WpC), jnp.float32)],
    )(x, w2, bias_col, gamma_col, beta_col, chan_pool)

    # (N, Hp, Wp*Cout) -> NCHW to match the PyTorch module's output layout.
    return out.reshape(N, Hp, Wp, Cout).transpose(0, 3, 1, 2)


# ---------------------------------------------------------------------------
# Pure-JAX reference (module semantics) for the correctness check
# ---------------------------------------------------------------------------
def downconv_reference(x_nchw, w_hwio, bias, gamma, beta):
    x = jnp.transpose(x_nchw, (0, 2, 3, 1)).astype(jnp.float32)
    conv = lax.conv_general_dilated(
        x, w_hwio.astype(jnp.float32), window_strides=(1, 1), padding="VALID",
        dimension_numbers=("NHWC", "HWIO", "NHWC"),
    ) + bias
    pooled = lax.reduce_window(conv, -jnp.inf, lax.max,
                               (1, 2, 2, 1), (1, 2, 2, 1), "VALID")
    mean = jnp.mean(pooled, axis=(0, 1, 2), keepdims=True)
    var = jnp.mean((pooled - mean) ** 2, axis=(0, 1, 2), keepdims=True)
    y = (pooled - mean) * lax.rsqrt(var + 1e-5) * gamma + beta
    return jnp.maximum(y, 0.0).transpose(0, 3, 1, 2)


if __name__ == "__main__":
    # Module config: DownConv(kernel=3, in_channels=4, out_channels=8, NF=8)
    kernel, Cin, Cout, NF = 3, 4, 8, 8
    N, H, W = 2, 16, 16

    key = jax.random.PRNGKey(0)
    kx, kw, kb = jax.random.split(key, 3)
    x = jax.random.normal(kx, (N, Cin, H, W), dtype=jnp.float32)            # NCHW
    w = jax.random.normal(kw, (kernel, kernel, Cin, Cout), jnp.float32) * 0.1  # HWIO
    b = jax.random.normal(kb, (Cout,), jnp.float32) * 0.1
    gamma = jnp.ones((NF,), jnp.float32)     # BatchNorm2d default affine init
    beta = jnp.zeros((NF,), jnp.float32)

    out = jax.block_until_ready(downconv_forward(x, w, b, gamma, beta))

    Hp, Wp = (H - kernel + 1) // 2, (W - kernel + 1) // 2
    assert out.shape == (N, Cout, Hp, Wp), out.shape

    # Tight check: same bf16-rounded conv operands (isolates kernel math; only
    # f32 accumulation order differs).
    x_r = x.astype(jnp.bfloat16).astype(jnp.float32)
    w_r = w.astype(jnp.bfloat16).astype(jnp.float32)
    ref_r = downconv_reference(x_r, w_r, b, gamma, beta)
    assert jnp.allclose(out, ref_r, atol=2e-3, rtol=2e-3), \
        float(jnp.max(jnp.abs(out - ref_r)))

    # Loose check vs the pure-f32 module semantics (slack only covers the
    # declared bf16 rounding of the MXU operands).
    ref = downconv_reference(x, w, b, gamma, beta)
    assert jnp.allclose(out, ref, atol=5e-2, rtol=5e-2), \
        float(jnp.max(jnp.abs(out - ref)))

    print("KERNEL_OK")
</pallas_src>

<mosaic_0001>
module attributes {stable_mosaic.version = 11 : i64} {
  func.func @kernel(%arg0: memref<2x16x64xbf16, #tpu.memory_space<vmem>>, %arg1: memref<3x64x112xbf16, #tpu.memory_space<vmem>>, %arg2: memref<1x56xf32, #tpu.memory_space<vmem>>, %arg3: memref<1x56xf32, #tpu.memory_space<vmem>>, %arg4: memref<1x56xf32, #tpu.memory_space<vmem>>, %arg5: memref<56x56xf32, #tpu.memory_space<vmem>>, %arg6: memref<2x7x56xf32, #tpu.memory_space<vmem>>, %arg7: memref<14x112xf32, #tpu.memory_space<vmem>>) attributes {dimension_semantics = [], scalar_prefetch = 0 : i64, scratch_operands = 1 : i64, tpu.core_type = #tpu.core_type<tc>} {
    %cst = arith.constant 0.000000e+00 : f32
    %0 = vector.broadcast %cst : f32 to vector<1x56xf32>
    %cst_0 = arith.constant 0.000000e+00 : f32
    %1 = vector.broadcast %cst_0 : f32 to vector<1x56xf32>
    %cst_1 = arith.constant 0.000000e+00 : f32
    %2 = vector.broadcast %cst_1 : f32 to vector<14x112xf32>
    %c0 = arith.constant 0 : index
    %c0_2 = arith.constant 0 : index
    %c0_3 = arith.constant 0 : index
    %3 = vector.load %arg0[%c0, %c0_2, %c0_3] : memref<2x16x64xbf16, #tpu.memory_space<vmem>>, vector<1x14x64xbf16>
    %4 = vector.shape_cast %3 : vector<1x14x64xbf16> to vector<14x64xbf16>
    %c0_4 = arith.constant 0 : index
    %c0_5 = arith.constant 0 : index
    %c0_6 = arith.constant 0 : index
    %5 = vector.load %arg1[%c0_4, %c0_5, %c0_6] : memref<3x64x112xbf16, #tpu.memory_space<vmem>>, vector<1x64x112xbf16>
    %6 = vector.shape_cast %5 : vector<1x64x112xbf16> to vector<64x112xbf16>
    %cst_7 = arith.constant dense<0.000000e+00> : vector<14x112xf32>
    %7 = tpu.matmul %4, %6, %cst_7 {dimension_numbers = #tpu.dot_dimension_numbers<[1], [0], [0], [1], [0, 0, 1, 1], [], []>} : vector<14x64xbf16>, vector<64x112xbf16>, vector<14x112xf32> -> vector<14x112xf32>
    %8 = arith.addf %2, %7 : vector<14x112xf32>
    %c0_8 = arith.constant 0 : index
    %c1 = arith.constant 1 : index
    %c0_9 = arith.constant 0 : index
    %9 = vector.load %arg0[%c0_8, %c1, %c0_9] : memref<2x16x64xbf16, #tpu.memory_space<vmem>>, vector<1x14x64xbf16>
    %10 = vector.shape_cast %9 : vector<1x14x64xbf16> to vector<14x64xbf16>
    %c1_10 = arith.constant 1 : index
    %c0_11 = arith.constant 0 : index
    %c0_12 = arith.constant 0 : index
    %11 = vector.load %arg1[%c1_10, %c0_11, %c0_12] : memref<3x64x112xbf16, #tpu.memory_space<vmem>>, vector<1x64x112xbf16>
    %12 = vector.shape_cast %11 : vector<1x64x112xbf16> to vector<64x112xbf16>
    %cst_13 = arith.constant dense<0.000000e+00> : vector<14x112xf32>
    %13 = tpu.matmul %10, %12, %cst_13 {dimension_numbers = #tpu.dot_dimension_numbers<[1], [0], [0], [1], [0, 0, 1, 1], [], []>} : vector<14x64xbf16>, vector<64x112xbf16>, vector<14x112xf32> -> vector<14x112xf32>
    %14 = arith.addf %8, %13 : vector<14x112xf32>
    %c0_14 = arith.constant 0 : index
    %c2 = arith.constant 2 : index
    %c0_15 = arith.constant 0 : index
    %15 = vector.load %arg0[%c0_14, %c2, %c0_15] : memref<2x16x64xbf16, #tpu.memory_space<vmem>>, vector<1x14x64xbf16>
    %16 = vector.shape_cast %15 : vector<1x14x64xbf16> to vector<14x64xbf16>
    %c2_16 = arith.constant 2 : index
    %c0_17 = arith.constant 0 : index
    %c0_18 = arith.constant 0 : index
    %17 = vector.load %arg1[%c2_16, %c0_17, %c0_18] : memref<3x64x112xbf16, #tpu.memory_space<vmem>>, vector<1x64x112xbf16>
    %18 = vector.shape_cast %17 : vector<1x64x112xbf16> to vector<64x112xbf16>
    %cst_19 = arith.constant dense<0.000000e+00> : vector<14x112xf32>
    %19 = tpu.matmul %16, %18, %cst_19 {dimension_numbers = #tpu.dot_dimension_numbers<[1], [0], [0], [1], [0, 0, 1, 1], [], []>} : vector<14x64xbf16>, vector<64x112xbf16>, vector<14x112xf32> -> vector<14x112xf32>
    %20 = arith.addf %14, %19 : vector<14x112xf32>
    %c0_20 = arith.constant 0 : index
    %c0_21 = arith.constant 0 : index
    %21 = vector.load %arg7[%c0_20, %c0_21] : memref<14x112xf32, #tpu.memory_space<vmem>>, vector<14x112xf32>
    tpu.vector_store %arg7[%c0_20, %c0_21], %20 {strides = array<i32>} : memref<14x112xf32, #tpu.memory_space<vmem>>, vector<14x112xf32>,
    %c0_22 = arith.constant 0 : index
    %c0_23 = arith.constant 0 : index
    %22 = tpu.strided_load %arg7[%c0_22, %c0_23] {strides = array<i32: 2, 1>} : memref<14x112xf32, #tpu.memory_space<vmem>>, vector<7x112xf32>
    %c1_24 = arith.constant 1 : index
    %c0_25 = arith.constant 0 : index
    %23 = tpu.strided_load %arg7[%c1_24, %c0_25] {strides = array<i32: 2, 1>} : memref<14x112xf32, #tpu.memory_space<vmem>>, vector<7x112xf32>
    %24 = arith.maximumf %22, %23 : vector<7x112xf32>
    %25 = vector.extract_strided_slice %24 {offsets = [0, 0], sizes = [7, 56], strides = [1, 1]} : vector<7x112xf32> to vector<7x56xf32>
    %26 = vector.extract_strided_slice %24 {offsets = [0, 56], sizes = [7, 56], strides = [1, 1]} : vector<7x112xf32> to vector<7x56xf32>
    %27 = arith.maximumf %25, %26 : vector<7x56xf32>
    %c0_26 = arith.constant 0 : index
    %c0_27 = arith.constant 0 : index
    %28 = vector.load %arg2[%c0_26, %c0_27] : memref<1x56xf32, #tpu.memory_space<vmem>>, vector<1x56xf32>
    %29 = vector.broadcast %28 : vector<1x56xf32> to vector<7x56xf32>
    %30 = arith.addf %27, %29 : vector<7x56xf32>
    %cst_28 = arith.constant dense<0.000000e+00> : vector<56xf32>
    %31 = vector.multi_reduction <add>, %30, %cst_28 [0] : vector<7x56xf32> to vector<56xf32>
    %32 = vector.shape_cast %31 : vector<56xf32> to vector<1x56xf32>
    %33 = arith.addf %0, %32 : vector<1x56xf32>
    %34 = arith.mulf %30, %30 : vector<7x56xf32>
    %cst_29 = arith.constant dense<0.000000e+00> : vector<56xf32>
    %35 = vector.multi_reduction <add>, %34, %cst_29 [0] : vector<7x56xf32> to vector<56xf32>
    %36 = vector.shape_cast %35 : vector<56xf32> to vector<1x56xf32>
    %37 = arith.addf %1, %36 : vector<1x56xf32>
    %cst_30 = arith.constant 0.000000e+00 : f32
    %38 = vector.broadcast %cst_30 : f32 to vector<14x112xf32>
    %c1_31 = arith.constant 1 : index
    %c0_32 = arith.constant 0 : index
    %c0_33 = arith.constant 0 : index
    %39 = vector.load %arg0[%c1_31, %c0_32, %c0_33] : memref<2x16x64xbf16, #tpu.memory_space<vmem>>, vector<1x14x64xbf16>
    %40 = vector.shape_cast %39 : vector<1x14x64xbf16> to vector<14x64xbf16>
    %c0_34 = arith.constant 0 : index
    %c0_35 = arith.constant 0 : index
    %c0_36 = arith.constant 0 : index
    %41 = vector.load %arg1[%c0_34, %c0_35, %c0_36] : memref<3x64x112xbf16, #tpu.memory_space<vmem>>, vector<1x64x112xbf16>
    %42 = vector.shape_cast %41 : vector<1x64x112xbf16> to vector<64x112xbf16>
    %cst_37 = arith.constant dense<0.000000e+00> : vector<14x112xf32>
    %43 = tpu.matmul %40, %42, %cst_37 {dimension_numbers = #tpu.dot_dimension_numbers<[1], [0], [0], [1], [0, 0, 1, 1], [], []>} : vector<14x64xbf16>, vector<64x112xbf16>, vector<14x112xf32> -> vector<14x112xf32>
    %44 = arith.addf %38, %43 : vector<14x112xf32>
    %c1_38 = arith.constant 1 : index
    %c1_39 = arith.constant 1 : index
    %c0_40 = arith.constant 0 : index
    %45 = vector.load %arg0[%c1_38, %c1_39, %c0_40] : memref<2x16x64xbf16, #tpu.memory_space<vmem>>, vector<1x14x64xbf16>
    %46 = vector.shape_cast %45 : vector<1x14x64xbf16> to vector<14x64xbf16>
    %c1_41 = arith.constant 1 : index
    %c0_42 = arith.constant 0 : index
    %c0_43 = arith.constant 0 : index
    %47 = vector.load %arg1[%c1_41, %c0_42, %c0_43] : memref<3x64x112xbf16, #tpu.memory_space<vmem>>, vector<1x64x112xbf16>
    %48 = vector.shape_cast %47 : vector<1x64x112xbf16> to vector<64x112xbf16>
    %cst_44 = arith.constant dense<0.000000e+00> : vector<14x112xf32>
    %49 = tpu.matmul %46, %48, %cst_44 {dimension_numbers = #tpu.dot_dimension_numbers<[1], [0], [0], [1], [0, 0, 1, 1], [], []>} : vector<14x64xbf16>, vector<64x112xbf16>, vector<14x112xf32> -> vector<14x112xf32>
    %50 = arith.addf %44, %49 : vector<14x112xf32>
    %c1_45 = arith.constant 1 : index
    %c2_46 = arith.constant 2 : index
    %c0_47 = arith.constant 0 : index
    %51 = vector.load %arg0[%c1_45, %c2_46, %c0_47] : memref<2x16x64xbf16, #tpu.memory_space<vmem>>, vector<1x14x64xbf16>
    %52 = vector.shape_cast %51 : vector<1x14x64xbf16> to vector<14x64xbf16>
    %c2_48 = arith.constant 2 : index
    %c0_49 = arith.constant 0 : index
    %c0_50 = arith.constant 0 : index
    %53 = vector.load %arg1[%c2_48, %c0_49, %c0_50] : memref<3x64x112xbf16, #tpu.memory_space<vmem>>, vector<1x64x112xbf16>
    %54 = vector.shape_cast %53 : vector<1x64x112xbf16> to vector<64x112xbf16>
    %cst_51 = arith.constant dense<0.000000e+00> : vector<14x112xf32>
    %55 = tpu.matmul %52, %54, %cst_51 {dimension_numbers = #tpu.dot_dimension_numbers<[1], [0], [0], [1], [0, 0, 1, 1], [], []>} : vector<14x64xbf16>, vector<64x112xbf16>, vector<14x112xf32> -> vector<14x112xf32>
    %56 = arith.addf %50, %55 : vector<14x112xf32>
    %c0_52 = arith.constant 0 : index
    %c0_53 = arith.constant 0 : index
    %57 = vector.load %arg7[%c0_52, %c0_53] : memref<14x112xf32, #tpu.memory_space<vmem>>, vector<14x112xf32>
    tpu.vector_store %arg7[%c0_52, %c0_53], %56 {strides = array<i32>} : memref<14x112xf32, #tpu.memory_space<vmem>>, vector<14x112xf32>,
    %c0_54 = arith.constant 0 : index
    %c0_55 = arith.constant 0 : index
    %58 = tpu.strided_load %arg7[%c0_54, %c0_55] {strides = array<i32: 2, 1>} : memref<14x112xf32, #tpu.memory_space<vmem>>, vector<7x112xf32>
    %c1_56 = arith.constant 1 : index
    %c0_57 = arith.constant 0 : index
    %59 = tpu.strided_load %arg7[%c1_56, %c0_57] {strides = array<i32: 2, 1>} : memref<14x112xf32, #tpu.memory_space<vmem>>, vector<7x112xf32>
    %60 = arith.maximumf %58, %59 : vector<7x112xf32>
    %61 = vector.extract_strided_slice %60 {offsets = [0, 0], sizes = [7, 56], strides = [1, 1]} : vector<7x112xf32> to vector<7x56xf32>
    %62 = vector.extract_strided_slice %60 {offsets = [0, 56], sizes = [7, 56], strides = [1, 1]} : vector<7x112xf32> to vector<7x56xf32>
    %63 = arith.maximumf %61, %62 : vector<7x56xf32>
    %c0_58 = arith.constant 0 : index
    %c0_59 = arith.constant 0 : index
    %64 = vector.load %arg2[%c0_58, %c0_59] : memref<1x56xf32, #tpu.memory_space<vmem>>, vector<1x56xf32>
    %65 = vector.broadcast %64 : vector<1x56xf32> to vector<7x56xf32>
    %66 = arith.addf %63, %65 : vector<7x56xf32>
    %cst_60 = arith.constant dense<0.000000e+00> : vector<56xf32>
    %67 = vector.multi_reduction <add>, %66, %cst_60 [0] : vector<7x56xf32> to vector<56xf32>
    %68 = vector.shape_cast %67 : vector<56xf32> to vector<1x56xf32>
    %69 = arith.addf %33, %68 : vector<1x56xf32>
    %70 = arith.mulf %66, %66 : vector<7x56xf32>
    %cst_61 = arith.constant dense<0.000000e+00> : vector<56xf32>
    %71 = vector.multi_reduction <add>, %70, %cst_61 [0] : vector<7x56xf32> to vector<56xf32>
    %72 = vector.shape_cast %71 : vector<56xf32> to vector<1x56xf32>
    %73 = arith.addf %37, %72 : vector<1x56xf32>
    %c0_62 = arith.constant 0 : index
    %c0_63 = arith.constant 0 : index
    %74 = vector.load %arg5[%c0_62, %c0_63] : memref<56x56xf32, #tpu.memory_space<vmem>>, vector<56x56xf32>
    %cst_64 = arith.constant dense<0.000000e+00> : vector<1x56xf32>
    %75 = tpu.matmul %69, %74, %cst_64 {dimension_numbers = #tpu.dot_dimension_numbers<[1], [0], [0], [1], [0, 0, 1, 1], [], []>} : vector<1x56xf32>, vector<56x56xf32>, vector<1x56xf32> -> vector<1x56xf32>
    %cst_65 = arith.constant 9.800000e+01 : f32
    %76 = vector.broadcast %cst_65 : f32 to vector<1x56xf32>
    %77 = arith.divf %75, %76 : vector<1x56xf32>
    %c0_66 = arith.constant 0 : index
    %c0_67 = arith.constant 0 : index
    %78 = vector.load %arg5[%c0_66, %c0_67] : memref<56x56xf32, #tpu.memory_space<vmem>>, vector<56x56xf32>
    %cst_68 = arith.constant dense<0.000000e+00> : vector<1x56xf32>
    %79 = tpu.matmul %73, %78, %cst_68 {dimension_numbers = #tpu.dot_dimension_numbers<[1], [0], [0], [1], [0, 0, 1, 1], [], []>} : vector<1x56xf32>, vector<56x56xf32>, vector<1x56xf32> -> vector<1x56xf32>
    %cst_69 = arith.constant 9.800000e+01 : f32
    %80 = vector.broadcast %cst_69 : f32 to vector<1x56xf32>
    %81 = arith.divf %79, %80 : vector<1x56xf32>
    %82 = arith.mulf %77, %77 : vector<1x56xf32>
    %83 = arith.subf %81, %82 : vector<1x56xf32>
    %cst_70 = arith.constant 0.000000e+00 : f32
    %84 = vector.broadcast %cst_70 : f32 to vector<1x56xf32>
    %85 = arith.maximumf %83, %84 : vector<1x56xf32>
    %c0_71 = arith.constant 0 : index
    %c0_72 = arith.constant 0 : index
    %86 = vector.load %arg3[%c0_71, %c0_72] : memref<1x56xf32, #tpu.memory_space<vmem>>, vector<1x56xf32>
    %cst_73 = arith.constant 9.99999974E-6 : f32
    %87 = vector.broadcast %cst_73 : f32 to vector<1x56xf32>
    %88 = arith.addf %85, %87 : vector<1x56xf32>
    %89 = math.rsqrt %88 : vector<1x56xf32>
    %90 = arith.mulf %86, %89 : vector<1x56xf32>
    %c0_74 = arith.constant 0 : index
    %c0_75 = arith.constant 0 : index
    %91 = vector.load %arg4[%c0_74, %c0_75] : memref<1x56xf32, #tpu.memory_space<vmem>>, vector<1x56xf32>
    %92 = arith.mulf %77, %90 : vector<1x56xf32>
    %93 = arith.subf %91, %92 : vector<1x56xf32>
    %94 = vector.broadcast %90 : vector<1x56xf32> to vector<7x56xf32>
    %95 = arith.mulf %30, %94 : vector<7x56xf32>
    %96 = vector.broadcast %93 : vector<1x56xf32> to vector<7x56xf32>
    %97 = arith.addf %95, %96 : vector<7x56xf32>
    %cst_76 = arith.constant 0.000000e+00 : f32
    %98 = vector.broadcast %cst_76 : f32 to vector<7x56xf32>
    %99 = arith.maximumf %97, %98 : vector<7x56xf32>
    %c0_77 = arith.constant 0 : index
    %c0_78 = arith.constant 0 : index
    %c0_79 = arith.constant 0 : index
    %100 = vector.load %arg6[%c0_77, %c0_78, %c0_79] : memref<2x7x56xf32, #tpu.memory_space<vmem>>, vector<1x7x56xf32>
    %101 = vector.shape_cast %100 : vector<1x7x56xf32> to vector<7x56xf32>
    %102 = vector.shape_cast %99 : vector<7x56xf32> to vector<1x7x56xf32>
    tpu.vector_store %arg6[%c0_77, %c0_78, %c0_79], %102 {strides = array<i32>} : memref<2x7x56xf32, #tpu.memory_space<vmem>>, vector<1x7x56xf32>,
    %103 = vector.broadcast %90 : vector<1x56xf32> to vector<7x56xf32>
    %104 = arith.mulf %66, %103 : vector<7x56xf32>
    %105 = vector.broadcast %93 : vector<1x56xf32> to vector<7x56xf32>
    %106 = arith.addf %104, %105 : vector<7x56xf32>
    %cst_80 = arith.constant 0.000000e+00 : f32
    %107 = vector.broadcast %cst_80 : f32 to vector<7x56xf32>
    %108 = arith.maximumf %106, %107 : vector<7x56xf32>
    %c1_81 = arith.constant 1 : index
    %c0_82 = arith.constant 0 : index
    %c0_83 = arith.constant 0 : index
    %109 = vector.load %arg6[%c1_81, %c0_82, %c0_83] : memref<2x7x56xf32, #tpu.memory_space<vmem>>, vector<1x7x56xf32>
    %110 = vector.shape_cast %109 : vector<1x7x56xf32> to vector<7x56xf32>
    %111 = vector.shape_cast %108 : vector<7x56xf32> to vector<1x7x56xf32>
    tpu.vector_store %arg6[%c1_81, %c0_82, %c0_83], %111 {strides = array<i32>} : memref<2x7x56xf32, #tpu.memory_space<vmem>>, vector<1x7x56xf32>,
    return
  }
}

</mosaic_0001>

<llo_original>
// kernel: tile.18
$region0: #{tile.18}
  #allocation0 [shape = 's32[1]{0}', space=sflag, size = 0x4, scoped, tag = 'scoped memory for tile.18']
  %s0 = inlined_call_operand.vmem [shape: f32[8], index: 0, kind: input, shape index: {}]
  %s1 = inlined_call_operand.vmem [shape: f32[7,8], index: 1, kind: output, shape index: {}]
  // Predicated region
  $region2: #{tile.18} parent=0 // pred_check
    _
  $region3: #{tile.18} parent=0 // pred_check_branch
    %3 = sbr.rel (0) target = $region5
  $region4: #{tile.18} parent=0 // pred_region
    _
  $region5: #{tile.18} parent=0 // pred_fallthru
    _
  %v4 = vld [vmem:[%s0] ss:$0 sm:$0xff]
  %5 = vst [vmem:[%s1] sm:$0xff] %v4

// kernel: tile.19
$region0: #{tile.19}
  %s0 = inlined_call_operand.vmem [shape: f32[7,8], index: 0, kind: input, shape index: {}]
  %s1 = inlined_call_operand.vmem [shape: f32[1,56], index: 1, kind: output, shape index: {}]
  $region1: #{tile.19} parent=0
    #allocation0 [shape = 'u8[4096]{0}', space=vmem, size = 0x1000, scoped, tag = 'scoped mem for output reshape']
    %v2 = vld [vmem:[%s0] sm:$0x1]
    %vm3 = vcmask 64512
    %4 = vst.msk [vmem:[#allocation0] sm:$0x1] %vm3, %v2
    %s5 = scalar_lea.vmem %s0, 6
    %v6 = vld [vmem:[%s5] sm:$0x1]
    %7 = vrot.lane.b32.xlu0 %v6, 48
    %v8 = vpop.permute.xlu0 %7
    %vm9 = vcmask 458112
    %10 = vst.msk [vmem:[#allocation0] sm:$0x1] %vm9, %v8
    %s11 = scalar_lea.vmem %s0, 5
    %v12 = vld [vmem:[%s11] sm:$0x1]
    %13 = vrot.lane.b32.xlu0 %v12, 40
    %v14 = vpop.permute.xlu0 %13
    %vm15 = vcmask 392512
    %16 = vst.msk [vmem:[#allocation0] sm:$0x1] %vm15, %v14
    %s17 = scalar_lea.vmem %s0, 4
    %v18 = vld [vmem:[%s17] sm:$0x1]
    %19 = vrot.lane.b32.xlu0 %v18, 32
    %v20 = vpop.permute.xlu0 %19
    %vm21 = vcmask 326912
    %22 = vst.msk [vmem:[#allocation0] sm:$0x1] %vm21, %v20
    %s23 = scalar_lea.vmem %s0, 3
    %v24 = vld [vmem:[%s23] sm:$0x1]
    %25 = vrot.lane.b32.xlu0 %v24, 24
    %v26 = vpop.permute.xlu0 %25
    %vm27 = vcmask 261312
    %28 = vst.msk [vmem:[#allocation0] sm:$0x1] %vm27, %v26
    %s29 = scalar_lea.vmem %s0, 2
    %v30 = vld [vmem:[%s29] sm:$0x1]
    %31 = vrot.lane.b32.xlu0 %v30, 16
    %v32 = vpop.permute.xlu0 %31
    %vm33 = vcmask 195712
    %34 = vst.msk [vmem:[#allocation0] sm:$0x1] %vm33, %v32
    %s35 = scalar_lea.vmem %s0, 1
    %v36 = vld [vmem:[%s35] sm:$0x1]
    %37 = vrot.lane.b32.xlu0 %v36, 8
    %v38 = vpop.permute.xlu0 %37
    %vm39 = vcmask 130112
    %40 = vst.msk [vmem:[#allocation0] sm:$0x1] %vm39, %v38
    %s42 = sshll.u32 1, 1
    %s43 = ssub.s32 %s42, 1
    %v45 = vld [vmem:[#allocation0] sm:%s43]
    %s46 = sshll.u32 1, 1
    %s47 = ssub.s32 %s46, 1
    %48 = vst [vmem:[%s1] sm:%s47] %v45

// kernel: downconv_forward.1
$region0: #{downconv_forward.1}
  #allocation0 [shape = 'u32[]', space=smem, size = 0x4, offset = 0x4, fixed_abs, tag = 'smem constant byte address 0x4 - core index']
  #allocation1 [shape = 'u32[144,128]{1,0:T(1,128)}', space=vmem, size = 0x12000, scoped, tag = 'internal scratch']
  #allocation2 [shape = 'f32[14,112]{1,0:T(8,128)}', space=vmem, size = 0x2000, scoped, tag = 'scratch operand']
  %s0 = inlined_call_operand.vmem [shape: bf16[2,16,64], index: 0, kind: input, shape index: {}]
  %s1 = inlined_call_operand.vmem [shape: bf16[3,64,112], index: 1, kind: input, shape index: {}]
  %s2 = inlined_call_operand.vmem [shape: f32[1,56], index: 2, kind: input, shape index: {}]
  %s3 = inlined_call_operand.vmem [shape: f32[1,56], index: 3, kind: input, shape index: {}]
  %s4 = inlined_call_operand.vmem [shape: f32[1,56], index: 4, kind: input, shape index: {}]
  %s5 = inlined_call_operand.vmem [shape: f32[56,56], index: 5, kind: input, shape index: {}]
  %s6 = inlined_call_operand.vmem [shape: f32[2,7,56], index: 6, kind: output, shape index: {}]
  %s7 = sld [smem:[#allocation0]]
  $region34: #{downconv_forward.1} parent=0
    _
  %s9 = ssub.s32 1, %s7
  %s10 = scalar_select 0, %s9, %s7
  // Predicated region
  $region2: #{downconv_forward.1} parent=0 // pred_check
    _
  $region3: #{downconv_forward.1} parent=0 // pred_check_branch
    %12 = sbr.rel (0) target = $region5
  $region4: #{downconv_forward.1} parent=0 // pred_region
    _
  $region5: #{downconv_forward.1} parent=0 // pred_fallthru
    _
  // Predicated region
  $region6: #{downconv_forward.1} parent=0 // pred_check
    _
  $region7: #{downconv_forward.1} parent=0 // pred_check_branch
    %14 = sbr.rel (0) target = $region9
  $region8: #{downconv_forward.1} parent=0 // pred_region
    _
  $region9: #{downconv_forward.1} parent=0 // pred_fallthru
    _
  // Predicated region
  $region10: #{downconv_forward.1} parent=0 // pred_check
    _
  $region11: #{downconv_forward.1} parent=0 // pred_check_branch
    %16 = sbr.rel (0) target = $region13
  $region12: #{downconv_forward.1} parent=0 // pred_region
    _
  $region13: #{downconv_forward.1} parent=0 // pred_fallthru
    _
  // Predicated region
  $region14: #{downconv_forward.1} parent=0 // pred_check
    _
  $region15: #{downconv_forward.1} parent=0 // pred_check_branch
    %18 = sbr.rel (0) target = $region17
  $region16: #{downconv_forward.1} parent=0 // pred_region
    _
  $region17: #{downconv_forward.1} parent=0 // pred_fallthru
    _
  // Predicated region
  $region18: #{downconv_forward.1} parent=0 // pred_check
    _
  $region19: #{downconv_forward.1} parent=0 // pred_check_branch
    %20 = sbr.rel (0) target = $region21
  $region20: #{downconv_forward.1} parent=0 // pred_region
    _
  $region21: #{downconv_forward.1} parent=0 // pred_fallthru
    _
  // Predicated region
  $region22: #{downconv_forward.1} parent=0 // pred_check
    _
  $region23: #{downconv_forward.1} parent=0 // pred_check_branch
    %22 = sbr.rel (0) target = $region25
  $region24: #{downconv_forward.1} parent=0 // pred_region
    _
  $region25: #{downconv_forward.1} parent=0 // pred_fallthru
    _
  %v24 = vld [vmem:[%s0] sm:$0xf]
  %v25 = vld [vmem:[%s0 + $0x4] sm:$0x7]
  %v26 = vld [vmem:[%s1] sm:$0xf]
  %v27 = vld [vmem:[%s1 + $0x4] sm:$0xf]
  %v28 = vld [vmem:[%s1 + $0x8] sm:$0xf]
  %v29 = vld [vmem:[%s1 + $0xc] sm:$0xf]
  %v30 = vld [vmem:[%s1 + $0x10] sm:$0xf]
  %v31 = vld [vmem:[%s1 + $0x14] sm:$0xf]
  %v32 = vld [vmem:[%s1 + $0x18] sm:$0xf]
  %v33 = vld [vmem:[%s1 + $0x1c] sm:$0xf]
  %v34 = vld [vmem:[%s0 + $0x4] sm:$0xf]
  %s35 = scalar_lea.vmem %s1, 32
  %v36 = vld [vmem:[%s35] sm:$0xf]
  %v37 = vld [vmem:[%s35 + $0x4] sm:$0xf]
  %v38 = vld [vmem:[%s35 + $0x8] sm:$0xf]
  %v39 = vld [vmem:[%s35 + $0xc] sm:$0xf]
  %v40 = vld [vmem:[%s35 + $0x10] sm:$0xf]
  %v41 = vld [vmem:[%s35 + $0x14] sm:$0xf]
  %v42 = vld [vmem:[%s35 + $0x18] sm:$0xf]
  %v43 = vld [vmem:[%s35 + $0x1c] sm:$0xf]
  %v46 = vunpack.c.l.b16 %v24
  %v47 = vunpack.c.l.b16 %v34
  %v48 = vpack.c.b16 %v47, %v46
  %v50 = vshrl.u32 %v48, 16
  %v52 = vshll.u32 %v48, 16
  %v54 = vrot.slane %v52, 1
  %v55 = vor.u32 %v50, %v54
  %v64 = vunpack.c.l.b16 %v36
  %v65 = vunpack.c.l.b16 %v37
  %v66 = vunpack.c.l.b16 %v38
  %v67 = vunpack.c.l.b16 %v39
  %v68 = vunpack.c.l.b16 %v40
  %v69 = vunpack.c.l.b16 %v41
  %v70 = vunpack.c.l.b16 %v42
  %v71 = vunpack.c.l.b16 %v43
  %v72 = vpack.c.b16 %v65, %v64
  %v73 = vpack.c.b16 %v67, %v66
  %v74 = vpack.c.b16 %v69, %v68
  %v75 = vpack.c.b16 %v71, %v70
  %vm80 = vcmask 523264
  %v82 = vsel %vm80, %v55, 0
  %84 = vmatprep.subr.bf16.mxu0 0
  %85 = vmatpush1.bf16.msra.mxu0 0
  %86 = vmatprep.subr.bf16.mxu0 0
  %87 = vmatpush1.bf16.msra.mxu0 0
  %88 = vmatprep.subr.bf16.mxu0 0
  %89 = vmatpush1.bf16.msra.mxu0 0
  %90 = vmatprep.subr.bf16.mxu0 0
  %91 = vmatpush1.bf16.msra.mxu0 0
  %92 = vmatprep.subr.bf16.mxu0 0
  %93 = vmatpush1.bf16.msra.mxu0 %v75
  %94 = vmatprep.subr.bf16.mxu0 0
  %95 = vmatpush1.bf16.msra.mxu0 %v74
  %96 = vmatprep.subr.bf16.mxu0 0
  %97 = vmatpush1.bf16.msra.mxu0 %v73
  %98 = vmatprep.subr.bf16.mxu0 0
  %99 = vmatpush1.bf16.msra.mxu0 %v72
  %100 = vmatprep.subr.bf16.mxu0 0
  %101 = vmatpush2.bf16.msra.mxu0 0
  %102 = vmatprep.subr.bf16.mxu0 0
  %103 = vmatpush2.bf16.msra.mxu0 0
  %104 = vmatprep.subr.bf16.mxu0 0
  %105 = vmatpush2.bf16.msra.mxu0 0
  %106 = vmatprep.subr.bf16.mxu0 0
  %107 = vmatpush2.bf16.msra.mxu0 0
  %108 = vmatprep.subr.bf16.mxu0 0
  %109 = vmatpush2.bf16.msra.mxu0 0
  %110 = vmatprep.subr.bf16.mxu0 0
  %111 = vmatpush2.bf16.msra.mxu0 0
  %112 = vmatprep.subr.bf16.mxu0 0
  %113 = vmatpush2.bf16.msra.mxu0 0
  %114 = vmatprep.subr.bf16.mxu0 0
  %115 = vmatpush2.bf16.msra.mxu0 0
  %116 = vmatprep.mubr.bf16.mxu0 0
  %117 = vmatmul.mubr.bf16.gmra.mxu0 %v82
  %v118 = vpop.f32.mrf.mxu0
  %v119 = vadd.f32 0.0, %v118
  %v120 = vpop.f32.mrf.mxu0
  %v121 = vpop.f32.mrf.mxu0
  %v122 = vadd.f32 0.0, %v121
  %v123 = vpop.f32.mrf.mxu0
  %124 = vdwg.mxu0
  %v126 = vunpack.c.l.b16 %v25
  %v127 = vpack.c.b16 %v126, %v46
  %v136 = vunpack.c.l.b16 %v26
  %v137 = vunpack.c.l.b16 %v27
  %v138 = vunpack.c.l.b16 %v28
  %v139 = vunpack.c.l.b16 %v29
  %v140 = vunpack.c.l.b16 %v30
  %v141 = vunpack.c.l.b16 %v31
  %v142 = vunpack.c.l.b16 %v32
  %v143 = vunpack.c.l.b16 %v33
  %v144 = vpack.c.b16 %v137, %v136
  %v145 = vpack.c.b16 %v139, %v138
  %v146 = vpack.c.b16 %v141, %v140
  %v147 = vpack.c.b16 %v143, %v142
  %v153 = vsel %vm80, %v127, 0
  %155 = vmatprep.subr.bf16.mxu0 0
  %156 = vmatpush1.bf16.msra.mxu0 0
  %157 = vmatprep.subr.bf16.mxu0 0
  %158 = vmatpush1.bf16.msra.mxu0 0
  %159 = vmatprep.subr.bf16.mxu0 0
  %160 = vmatpush1.bf16.msra.mxu0 0
  %161 = vmatprep.subr.bf16.mxu0 0
  %162 = vmatpush1.bf16.msra.mxu0 0
  %163 = vmatprep.subr.bf16.mxu0 0
  %164 = vmatpush1.bf16.msra.mxu0 %v147
  %165 = vmatprep.subr.bf16.mxu0 0
  %166 = vmatpush1.bf16.msra.mxu0 %v146
  %167 = vmatprep.subr.bf16.mxu0 0
  %168 = vmatpush1.bf16.msra.mxu0 %v145
  %169 = vmatprep.subr.bf16.mxu0 0
  %170 = vmatpush1.bf16.msra.mxu0 %v144
  %171 = vmatprep.subr.bf16.mxu0 0
  %172 = vmatpush2.bf16.msra.mxu0 0
  %173 = vmatprep.subr.bf16.mxu0 0
  %174 = vmatpush2.bf16.msra.mxu0 0
  %175 = vmatprep.subr.bf16.mxu0 0
  %176 = vmatpush2.bf16.msra.mxu0 0
  %177 = vmatprep.subr.bf16.mxu0 0
  %178 = vmatpush2.bf16.msra.mxu0 0
  %179 = vmatprep.subr.bf16.mxu0 0
  %180 = vmatpush2.bf16.msra.mxu0 0
  %181 = vmatprep.subr.bf16.mxu0 0
  %182 = vmatpush2.bf16.msra.mxu0 0
  %183 = vmatprep.subr.bf16.mxu0 0
  %184 = vmatpush2.bf16.msra.mxu0 0
  %185 = vmatprep.subr.bf16.mxu0 0
  %186 = vmatpush2.bf16.msra.mxu0 0
  %187 = vmatprep.mubr.bf16.mxu0 0
  %188 = vmatmul.mubr.bf16.gmra.mxu0 %v153
  %v189 = vpop.f32.mrf.mxu0
  %v190 = vadd.f32 %v119, %v189
  %v191 = vpop.f32.mrf.mxu0
  %v192 = vpop.f32.mrf.mxu0
  %v193 = vadd.f32 %v122, %v192
  %v194 = vpop.f32.mrf.mxu0
  %195 = vdwg.mxu0
  %v196 = vld [vmem:[%s0] sm:$0xe]
  %s197 = scalar_lea.vmem %s1, 64
  %v198 = vld [vmem:[%s197] sm:$0xf]
  %v199 = vld [vmem:[%s197 + $0x4] sm:$0xf]
  %v200 = vld [vmem:[%s197 + $0x8] sm:$0xf]
  %v201 = vld [vmem:[%s197 + $0xc] sm:$0xf]
  %v202 = vld [vmem:[%s197 + $0x10] sm:$0xf]
  %v203 = vld [vmem:[%s197 + $0x14] sm:$0xf]
  %v204 = vld [vmem:[%s197 + $0x18] sm:$0xf]
  %v205 = vld [vmem:[%s197 + $0x1c] sm:$0xf]
  %v207 = vunpack.c.l.b16 %v196
  %v208 = vpack.c.b16 %v47, %v207
  %v209 = vrot.slane %v208, 1
  %v218 = vunpack.c.l.b16 %v198
  %v219 = vunpack.c.l.b16 %v199
  %v220 = vunpack.c.l.b16 %v200
  %v221 = vunpack.c.l.b16 %v201
  %v222 = vunpack.c.l.b16 %v202
  %v223 = vunpack.c.l.b16 %v203
  %v224 = vunpack.c.l.b16 %v204
  %v225 = vunpack.c.l.b16 %v205
  %v226 = vpack.c.b16 %v219, %v218
  %v227 = vpack.c.b16 %v221, %v220
  %v228 = vpack.c.b16 %v223, %v222
  %v229 = vpack.c.b16 %v225, %v224
  %v235 = vsel %vm80, %v209, 0
  %237 = vmatprep.subr.bf16.mxu0 0
  %238 = vmatpush1.bf16.msra.mxu0 0
  %239 = vmatprep.subr.bf16.mxu0 0
  %240 = vmatpush1.bf16.msra.mxu0 0
  %241 = vmatprep.subr.bf16.mxu0 0
  %242 = vmatpush1.bf16.msra.mxu0 0
  %243 = vmatprep.subr.bf16.mxu0 0
  %244 = vmatpush1.bf16.msra.mxu0 0
  %245 = vmatprep.subr.bf16.mxu0 0
  %246 = vmatpush1.bf16.msra.mxu0 %v229
  %247 = vmatprep.subr.bf16.mxu0 0
  %248 = vmatpush1.bf16.msra.mxu0 %v228
  %249 = vmatprep.subr.bf16.mxu0 0
  %250 = vmatpush1.bf16.msra.mxu0 %v227
  %251 = vmatprep.subr.bf16.mxu0 0
  %252 = vmatpush1.bf16.msra.mxu0 %v226
  %253 = vmatprep.subr.bf16.mxu0 0
  %254 = vmatpush2.bf16.msra.mxu0 0
  %255 = vmatprep.subr.bf16.mxu0 0
  %256 = vmatpush2.bf16.msra.mxu0 0
  %257 = vmatprep.subr.bf16.mxu0 0
  %258 = vmatpush2.bf16.msra.mxu0 0
  %259 = vmatprep.subr.bf16.mxu0 0
  %260 = vmatpush2.bf16.msra.mxu0 0
  %261 = vmatprep.subr.bf16.mxu0 0
  %262 = vmatpush2.bf16.msra.mxu0 0
  %263 = vmatprep.subr.bf16.mxu0 0
  %264 = vmatpush2.bf16.msra.mxu0 0
  %265 = vmatprep.subr.bf16.mxu0 0
  %266 = vmatpush2.bf16.msra.mxu0 0
  %267 = vmatprep.subr.bf16.mxu0 0
  %268 = vmatpush2.bf16.msra.mxu0 0
  %269 = vmatprep.mubr.bf16.mxu0 0
  %270 = vmatmul.mubr.bf16.gmra.mxu0 %v235
  %v271 = vpop.f32.mrf.mxu0
  %v272 = vadd.f32 0.0, %v271
  %v273 = vpop.f32.mrf.mxu0
  %v274 = vpop.f32.mrf.mxu0
  %v275 = vadd.f32 0.0, %v274
  %v276 = vpop.f32.mrf.mxu0
  %277 = vdwg.mxu0
  %v278 = vadd.f32 %v190, %v272
  %v279 = vadd.f32 %v193, %v275
  %vm280 = vcmask 916480
  %281 = vst.msk [vmem:[#allocation2] sm:$0xff] %vm280, %v278
  %vm282 = vcmask 914432
  %283 = vst.msk [vmem:[#allocation2 + $0x8] sm:$0x3f] %vm282, %v279
  %v284 = vld [vmem:[#allocation2] ss:$2 sm:$0x7f]
  %s285 = scalar_lea.vmem [#allocation2], 1
  %v286 = vld [vmem:[%s285] ss:$2 sm:$0x7f]
  %v287 = vmax.f32 %v284, %v286
  %289 = vrot.lane.b32.xlu0 %v287, 72
  %v290 = vpop.permute.xlu0 %289
  %v292 = vmax.f32 %v287, %v290
  %v293 = vld [vmem:[%s2] sm:$0x1]
  %v295 = vlaneseq
  %v296 = vshrl.u32 %v295, 7
  %v297 = vsub.s32 0, %v296
  %v298 = vrot.slane %v293, %v297
  %v300 = vadd.f32 %v292, %v298
  %vm301 = vcmask 456704
  %v302 = vsel %vm301, %v300, 0.0
  %v303 = vrot.slane %v302, 4
  %v304 = vadd.f32 %v302, %v303
  %v305 = vrot.slane %v304, 2
  %v306 = vadd.f32 %v304, %v305
  %v307 = vrot.slane %v306, 1
  %v308 = vadd.f32 %v306, %v307
  %v309 = vadd.f32 %v308, 0.0
  %v310 = vmul.f32 %v300, %v300
  %v311 = vsel %vm301, %v310, 0.0
  %v312 = vrot.slane %v311, 4
  %v313 = vadd.f32 %v311, %v312
  %v314 = vrot.slane %v313, 2
  %v315 = vadd.f32 %v313, %v314
  %v316 = vrot.slane %v315, 1
  %v317 = vadd.f32 %v315, %v316
  %v318 = vadd.f32 %v317, 0.0
  %s319 = scalar_lea.vmem %s0, 8
  %v320 = vld [vmem:[%s319] sm:$0xf]
  %v321 = vld [vmem:[%s319 + $0x4] sm:$0x7]
  %v322 = vld [vmem:[%s1] sm:$0xf]
  %v323 = vld [vmem:[%s1 + $0x4] sm:$0xf]
  %v324 = vld [vmem:[%s1 + $0x8] sm:$0xf]
  %v325 = vld [vmem:[%s1 + $0xc] sm:$0xf]
  %v326 = vld [vmem:[%s1 + $0x10] sm:$0xf]
  %v327 = vld [vmem:[%s1 + $0x14] sm:$0xf]
  %v328 = vld [vmem:[%s1 + $0x18] sm:$0xf]
  %v329 = vld [vmem:[%s1 + $0x1c] sm:$0xf]
  %v330 = vld [vmem:[%s319 + $0x4] sm:$0xf]
  %v331 = vld [vmem:[%s35] sm:$0xf]
  %v332 = vld [vmem:[%s35 + $0x4] sm:$0xf]
  %v333 = vld [vmem:[%s35 + $0x8] sm:$0xf]
  %v334 = vld [vmem:[%s35 + $0xc] sm:$0xf]
  %v335 = vld [vmem:[%s35 + $0x10] sm:$0xf]
  %v336 = vld [vmem:[%s35 + $0x14] sm:$0xf]
  %v337 = vld [vmem:[%s35 + $0x18] sm:$0xf]
  %v338 = vld [vmem:[%s35 + $0x1c] sm:$0xf]
  %v341 = vunpack.c.l.b16 %v320
  %v342 = vunpack.c.l.b16 %v330
  %v343 = vpack.c.b16 %v342, %v341
  %v345 = vshrl.u32 %v343, 16
  %v347 = vshll.u32 %v343, 16
  %v349 = vrot.slane %v347, 1
  %v350 = vor.u32 %v345, %v349
  %v359 = vunpack.c.l.b16 %v331
  %v360 = vunpack.c.l.b16 %v332
  %v361 = vunpack.c.l.b16 %v333
  %v362 = vunpack.c.l.b16 %v334
  %v363 = vunpack.c.l.b16 %v335
  %v364 = vunpack.c.l.b16 %v336
  %v365 = vunpack.c.l.b16 %v337
  %v366 = vunpack.c.l.b16 %v338
  %v367 = vpack.c.b16 %v360, %v359
  %v368 = vpack.c.b16 %v362, %v361
  %v369 = vpack.c.b16 %v364, %v363
  %v370 = vpack.c.b16 %v366, %v365
  %v376 = vsel %vm80, %v350, 0
  %378 = vmatprep.subr.bf16.mxu0 0
  %379 = vmatpush1.bf16.msra.mxu0 0
  %380 = vmatprep.subr.bf16.mxu0 0
  %381 = vmatpush1.bf16.msra.mxu0 0
  %382 = vmatprep.subr.bf16.mxu0 0
  %383 = vmatpush1.bf16.msra.mxu0 0
  %384 = vmatprep.subr.bf16.mxu0 0
  %385 = vmatpush1.bf16.msra.mxu0 0
  %386 = vmatprep.subr.bf16.mxu0 0
  %387 = vmatpush1.bf16.msra.mxu0 %v370
  %388 = vmatprep.subr.bf16.mxu0 0
  %389 = vmatpush1.bf16.msra.mxu0 %v369
  %390 = vmatprep.subr.bf16.mxu0 0
  %391 = vmatpush1.bf16.msra.mxu0 %v368
  %392 = vmatprep.subr.bf16.mxu0 0
  %393 = vmatpush1.bf16.msra.mxu0 %v367
  %394 = vmatprep.subr.bf16.mxu0 0
  %395 = vmatpush2.bf16.msra.mxu0 0
  %396 = vmatprep.subr.bf16.mxu0 0
  %397 = vmatpush2.bf16.msra.mxu0 0
  %398 = vmatprep.subr.bf16.mxu0 0
  %399 = vmatpush2.bf16.msra.mxu0 0
  %400 = vmatprep.subr.bf16.mxu0 0
  %401 = vmatpush2.bf16.msra.mxu0 0
  %402 = vmatprep.subr.bf16.mxu0 0
  %403 = vmatpush2.bf16.msra.mxu0 0
  %404 = vmatprep.subr.bf16.mxu0 0
  %405 = vmatpush2.bf16.msra.mxu0 0
  %406 = vmatprep.subr.bf16.mxu0 0
  %407 = vmatpush2.bf16.msra.mxu0 0
  %408 = vmatprep.subr.bf16.mxu0 0
  %409 = vmatpush2.bf16.msra.mxu0 0
  %410 = vmatprep.mubr.bf16.mxu0 0
  %411 = vmatmul.mubr.bf16.gmra.mxu0 %v376
  %v412 = vpop.f32.mrf.mxu0
  %v413 = vadd.f32 0.0, %v412
  %v414 = vpop.f32.mrf.mxu0
  %v415 = vpop.f32.mrf.mxu0
  %v416 = vadd.f32 0.0, %v415
  %v417 = vpop.f32.mrf.mxu0
  %418 = vdwg.mxu0
  %v420 = vunpack.c.l.b16 %v321
  %v421 = vpack.c.b16 %v420, %v341
  %v430 = vunpack.c.l.b16 %v322
  %v431 = vunpack.c.l.b16 %v323
  %v432 = vunpack.c.l.b16 %v324
  %v433 = vunpack.c.l.b16 %v325
  %v434 = vunpack.c.l.b16 %v326
  %v435 = vunpack.c.l.b16 %v327
  %v436 = vunpack.c.l.b16 %v328
  %v437 = vunpack.c.l.b16 %v329
  %v438 = vpack.c.b16 %v431, %v430
  %v439 = vpack.c.b16 %v433, %v432
  %v440 = vpack.c.b16 %v435, %v434
  %v441 = vpack.c.b16 %v437, %v436
  %v447 = vsel %vm80, %v421, 0
  %449 = vmatprep.subr.bf16.mxu0 0
  %450 = vmatpush1.bf16.msra.mxu0 0
  %451 = vmatprep.subr.bf16.mxu0 0
  %452 = vmatpush1.bf16.msra.mxu0 0
  %453 = vmatprep.subr.bf16.mxu0 0
  %454 = vmatpush1.bf16.msra.mxu0 0
  %455 = vmatprep.subr.bf16.mxu0 0
  %456 = vmatpush1.bf16.msra.mxu0 0
  %457 = vmatprep.subr.bf16.mxu0 0
  %458 = vmatpush1.bf16.msra.mxu0 %v441
  %459 = vmatprep.subr.bf16.mxu0 0
  %460 = vmatpush1.bf16.msra.mxu0 %v440
  %461 = vmatprep.subr.bf16.mxu0 0
  %462 = vmatpush1.bf16.msra.mxu0 %v439
  %463 = vmatprep.subr.bf16.mxu0 0
  %464 = vmatpush1.bf16.msra.mxu0 %v438
  %465 = vmatprep.subr.bf16.mxu0 0
  %466 = vmatpush2.bf16.msra.mxu0 0
  %467 = vmatprep.subr.bf16.mxu0 0
  %468 = vmatpush2.bf16.msra.mxu0 0
  %469 = vmatprep.subr.bf16.mxu0 0
  %470 = vmatpush2.bf16.msra.mxu0 0
  %471 = vmatprep.subr.bf16.mxu0 0
  %472 = vmatpush2.bf16.msra.mxu0 0
  %473 = vmatprep.subr.bf16.mxu0 0
  %474 = vmatpush2.bf16.msra.mxu0 0
  %475 = vmatprep.subr.bf16.mxu0 0
  %476 = vmatpush2.bf16.msra.mxu0 0
  %477 = vmatprep.subr.bf16.mxu0 0
  %478 = vmatpush2.bf16.msra.mxu0 0
  %479 = vmatprep.subr.bf16.mxu0 0
  %480 = vmatpush2.bf16.msra.mxu0 0
  %481 = vmatprep.mubr.bf16.mxu0 0
  %482 = vmatmul.mubr.bf16.gmra.mxu0 %v447
  %v483 = vpop.f32.mrf.mxu0
  %v484 = vadd.f32 %v413, %v483
  %v485 = vpop.f32.mrf.mxu0
  %v486 = vpop.f32.mrf.mxu0
  %v487 = vadd.f32 %v416, %v486
  %v488 = vpop.f32.mrf.mxu0
  %489 = vdwg.mxu0
  %v490 = vld [vmem:[%s319] sm:$0xe]
  %v491 = vld [vmem:[%s197] sm:$0xf]
  %v492 = vld [vmem:[%s197 + $0x4] sm:$0xf]
  %v493 = vld [vmem:[%s197 + $0x8] sm:$0xf]
  %v494 = vld [vmem:[%s197 + $0xc] sm:$0xf]
  %v495 = vld [vmem:[%s197 + $0x10] sm:$0xf]
  %v496 = vld [vmem:[%s197 + $0x14] sm:$0xf]
  %v497 = vld [vmem:[%s197 + $0x18] sm:$0xf]
  %v498 = vld [vmem:[%s197 + $0x1c] sm:$0xf]
  %v500 = vunpack.c.l.b16 %v490
  %v501 = vpack.c.b16 %v342, %v500
  %v502 = vrot.slane %v501, 1
  %v511 = vunpack.c.l.b16 %v491
  %v512 = vunpack.c.l.b16 %v492
  %v513 = vunpack.c.l.b16 %v493
  %v514 = vunpack.c.l.b16 %v494
  %v515 = vunpack.c.l.b16 %v495
  %v516 = vunpack.c.l.b16 %v496
  %v517 = vunpack.c.l.b16 %v497
  %v518 = vunpack.c.l.b16 %v498
  %v519 = vpack.c.b16 %v512, %v511
  %v520 = vpack.c.b16 %v514, %v513
  %v521 = vpack.c.b16 %v516, %v515
  %v522 = vpack.c.b16 %v518, %v517
  %v528 = vsel %vm80, %v502, 0
  %530 = vmatprep.subr.bf16.mxu0 0
  %531 = vmatpush1.bf16.msra.mxu0 0
  %532 = vmatprep.subr.bf16.mxu0 0
  %533 = vmatpush1.bf16.msra.mxu0 0
  %534 = vmatprep.subr.bf16.mxu0 0
  %535 = vmatpush1.bf16.msra.mxu0 0
  %536 = vmatprep.subr.bf16.mxu0 0
  %537 = vmatpush1.bf16.msra.mxu0 0
  %538 = vmatprep.subr.bf16.mxu0 0
  %539 = vmatpush1.bf16.msra.mxu0 %v522
  %540 = vmatprep.subr.bf16.mxu0 0
  %541 = vmatpush1.bf16.msra.mxu0 %v521
  %542 = vmatprep.subr.bf16.mxu0 0
  %543 = vmatpush1.bf16.msra.mxu0 %v520
  %544 = vmatprep.subr.bf16.mxu0 0
  %545 = vmatpush1.bf16.msra.mxu0 %v519
  %546 = vmatprep.subr.bf16.mxu0 0
  %547 = vmatpush2.bf16.msra.mxu0 0
  %548 = vmatprep.subr.bf16.mxu0 0
  %549 = vmatpush2.bf16.msra.mxu0 0
  %550 = vmatprep.subr.bf16.mxu0 0
  %551 = vmatpush2.bf16.msra.mxu0 0
  %552 = vmatprep.subr.bf16.mxu0 0
  %553 = vmatpush2.bf16.msra.mxu0 0
  %554 = vmatprep.subr.bf16.mxu0 0
  %555 = vmatpush2.bf16.msra.mxu0 0
  %556 = vmatprep.subr.bf16.mxu0 0
  %557 = vmatpush2.bf16.msra.mxu0 0
  %558 = vmatprep.subr.bf16.mxu0 0
  %559 = vmatpush2.bf16.msra.mxu0 0
  %560 = vmatprep.subr.bf16.mxu0 0
  %561 = vmatpush2.bf16.msra.mxu0 0
  %562 = vmatprep.mubr.bf16.mxu0 0
  %563 = vmatmul.mubr.bf16.gmra.mxu0 %v528
  %v564 = vpop.f32.mrf.mxu0
  %v565 = vadd.f32 0.0, %v564
  %v566 = vpop.f32.mrf.mxu0
  %v567 = vpop.f32.mrf.mxu0
  %v568 = vadd.f32 0.0, %v567
  %v569 = vpop.f32.mrf.mxu0
  %570 = vdwg.mxu0
  %v571 = vadd.f32 %v484, %v565
  %v572 = vadd.f32 %v487, %v568
  %573 = vst.msk [vmem:[#allocation2] sm:$0xff] %vm280, %v571
  %574 = vst.msk [vmem:[#allocation2 + $0x8] sm:$0x3f] %vm282, %v572
  %v575 = vld [vmem:[#allocation2] ss:$2 sm:$0x7f]
  %v576 = vld [vmem:[%s285] ss:$2 sm:$0x7f]
  %v577 = vmax.f32 %v575, %v576
  %579 = vrot.lane.b32.xlu0 %v577, 72
  %v580 = vpop.permute.xlu0 %579
  %v582 = vmax.f32 %v577, %v580
  %v583 = vld [vmem:[%s2] sm:$0x1]
  %v585 = vlaneseq
  %v586 = vshrl.u32 %v585, 7
  %v587 = vsub.s32 0, %v586
  %v588 = vrot.slane %v583, %v587
  %v590 = vadd.f32 %v582, %v588
  %v591 = vsel %vm301, %v590, 0.0
  %v592 = vrot.slane %v591, 4
  %v593 = vadd.f32 %v591, %v592
  %v594 = vrot.slane %v593, 2
  %v595 = vadd.f32 %v593, %v594
  %v596 = vrot.slane %v595, 1
  %v597 = vadd.f32 %v595, %v596
  %v598 = vadd.f32 %v309, %v597
  %v599 = vmul.f32 %v590, %v590
  %v600 = vsel %vm301, %v599, 0.0
  %v601 = vrot.slane %v600, 4
  %v602 = vadd.f32 %v600, %v601
  %v603 = vrot.slane %v602, 2
  %v604 = vadd.f32 %v602, %v603
  %v605 = vrot.slane %v604, 1
  %v606 = vadd.f32 %v604, %v605
  %v607 = vadd.f32 %v318, %v606
  %v608 = vld [vmem:[%s5] sm:$0xff]
  %v609 = vld [vmem:[%s5 + $0x8] sm:$0xff]
  %v610 = vld [vmem:[%s5 + $0x10] sm:$0xff]
  %v611 = vld [vmem:[%s5 + $0x18] sm:$0xff]
  %v612 = vld [vmem:[%s5 + $0x20] sm:$0xff]
  %v613 = vld [vmem:[%s5 + $0x28] sm:$0xff]
  %v614 = vld [vmem:[%s5 + $0x30] sm:$0xff]
  %vm615 = vcmask 457728
  %v617 = vsel %vm615, %v598, 0
  %619 = vmatprep.subr.mxu0 0.0
  %620 = vmatpush1.msra.mxu0 0.0
  %621 = vmatprep.subr.mxu0 0.0
  %622 = vmatpush1.msra.mxu0 0.0
  %623 = vmatprep.subr.mxu0 0.0
  %624 = vmatpush1.msra.mxu0 0.0
  %625 = vmatprep.subr.mxu0 0.0
  %626 = vmatpush1.msra.mxu0 0.0
  %627 = vmatprep.subr.mxu0 0.0
  %628 = vmatpush1.msra.mxu0 0.0
  %629 = vmatprep.subr.mxu0 0.0
  %630 = vmatpush1.msra.mxu0 0.0
  %631 = vmatprep.subr.mxu0 0.0
  %632 = vmatpush1.msra.mxu0 0.0
  %633 = vmatprep.subr.mxu0 0.0
  %634 = vmatpush1.msra.mxu0 0.0
  %635 = vmatprep.subr.mxu0 0.0
  %636 = vmatpush1.msra.mxu0 0.0
  %637 = vmatprep.subr.mxu0 0.0
  %638 = vmatpush1.msra.mxu0 %v614
  %639 = vmatprep.subr.mxu0 0.0
  %640 = vmatpush1.msra.mxu0 %v613
  %641 = vmatprep.subr.mxu0 0.0
  %642 = vmatpush1.msra.mxu0 %v612
  %643 = vmatprep.subr.mxu0 0.0
  %644 = vmatpush1.msra.mxu0 %v611
  %645 = vmatprep.subr.mxu0 0.0
  %646 = vmatpush1.msra.mxu0 %v610
  %647 = vmatprep.subr.mxu0 0.0
  %648 = vmatpush1.msra.mxu0 %v609
  %649 = vmatprep.subr.mxu0 0.0
  %650 = vmatpush1.msra.mxu0 %v608
  %651 = vmatprep.subr.mxu0 0.0
  %652 = vmatpush2.msra.mxu0 0.0
  %653 = vmatprep.subr.mxu0 0.0
  %654 = vmatpush2.msra.mxu0 0.0
  %655 = vmatprep.subr.mxu0 0.0
  %656 = vmatpush2.msra.mxu0 0.0
  %657 = vmatprep.subr.mxu0 0.0
  %658 = vmatpush2.msra.mxu0 0.0
  %659 = vmatprep.subr.mxu0 0.0
  %660 = vmatpush2.msra.mxu0 0.0
  %661 = vmatprep.subr.mxu0 0.0
  %662 = vmatpush2.msra.mxu0 0.0
  %663 = vmatprep.subr.mxu0 0.0
  %664 = vmatpush2.msra.mxu0 0.0
  %665 = vmatprep.subr.mxu0 0.0
  %666 = vmatpush2.msra.mxu0 0.0
  %667 = vmatprep.subr.mxu0 0.0
  %668 = vmatpush2.msra.mxu0 0.0
  %669 = vmatprep.subr.mxu0 0.0
  %670 = vmatpush2.msra.mxu0 0.0
  %671 = vmatprep.subr.mxu0 0.0
  %672 = vmatpush2.msra.mxu0 0.0
  %673 = vmatprep.subr.mxu0 0.0
  %674 = vmatpush2.msra.mxu0 0.0
  %675 = vmatprep.subr.mxu0 0.0
  %676 = vmatpush2.msra.mxu0 0.0
  %677 = vmatprep.subr.mxu0 0.0
  %678 = vmatpush2.msra.mxu0 0.0
  %679 = vmatprep.subr.mxu0 0.0
  %680 = vmatpush2.msra.mxu0 0.0
  %681 = vmatprep.subr.mxu0 0.0
  %682 = vmatpush2.msra.mxu0 0.0
  %683 = vmatprep.mubr.f32.mxu0 0.0
  %684 = vmatmul.mubr.f32.gmra.mxu0 %v617
  %v685 = vpop.f32.mrf.mxu0
  %v686 = vadd.f32 0.0, %v685
  %v687 = vpop.f32.mrf.mxu0
  %688 = vdwg.mxu0
  %v689 = vrcp.pop 98.0
  %v690 = vmul.f32 %v686, %v689
  %v692 = vsel %vm615, %v607, 0
  %694 = vmatprep.subr.mxu0 0.0
  %695 = vmatpush1.msra.mxu0 0.0
  %696 = vmatprep.subr.mxu0 0.0
  %697 = vmatpush1.msra.mxu0 0.0
  %698 = vmatprep.subr.mxu0 0.0
  %699 = vmatpush1.msra.mxu0 0.0
  %700 = vmatprep.subr.mxu0 0.0
  %701 = vmatpush1.msra.mxu0 0.0
  %702 = vmatprep.subr.mxu0 0.0
  %703 = vmatpush1.msra.mxu0 0.0
  %704 = vmatprep.subr.mxu0 0.0
  %705 = vmatpush1.msra.mxu0 0.0
  %706 = vmatprep.subr.mxu0 0.0
  %707 = vmatpush1.msra.mxu0 0.0
  %708 = vmatprep.subr.mxu0 0.0
  %709 = vmatpush1.msra.mxu0 0.0
  %710 = vmatprep.subr.mxu0 0.0
  %711 = vmatpush1.msra.mxu0 0.0
  %712 = vmatprep.subr.mxu0 0.0
  %713 = vmatpush1.msra.mxu0 %v614
  %714 = vmatprep.subr.mxu0 0.0
  %715 = vmatpush1.msra.mxu0 %v613
  %716 = vmatprep.subr.mxu0 0.0
  %717 = vmatpush1.msra.mxu0 %v612
  %718 = vmatprep.subr.mxu0 0.0
  %719 = vmatpush1.msra.mxu0 %v611
  %720 = vmatprep.subr.mxu0 0.0
  %721 = vmatpush1.msra.mxu0 %v610
  %722 = vmatprep.subr.mxu0 0.0
  %723 = vmatpush1.msra.mxu0 %v609
  %724 = vmatprep.subr.mxu0 0.0
  %725 = vmatpush1.msra.mxu0 %v608
  %726 = vmatprep.subr.mxu0 0.0
  %727 = vmatpush2.msra.mxu0 0.0
  %728 = vmatprep.subr.mxu0 0.0
  %729 = vmatpush2.msra.mxu0 0.0
  %730 = vmatprep.subr.mxu0 0.0
  %731 = vmatpush2.msra.mxu0 0.0
  %732 = vmatprep.subr.mxu0 0.0
  %733 = vmatpush2.msra.mxu0 0.0
  %734 = vmatprep.subr.mxu0 0.0
  %735 = vmatpush2.msra.mxu0 0.0
  %736 = vmatprep.subr.mxu0 0.0
  %737 = vmatpush2.msra.mxu0 0.0
  %738 = vmatprep.subr.mxu0 0.0
  %739 = vmatpush2.msra.mxu0 0.0
  %740 = vmatprep.subr.mxu0 0.0
  %741 = vmatpush2.msra.mxu0 0.0
  %742 = vmatprep.subr.mxu0 0.0
  %743 = vmatpush2.msra.mxu0 0.0
  %744 = vmatprep.subr.mxu0 0.0
  %745 = vmatpush2.msra.mxu0 0.0
  %746 = vmatprep.subr.mxu0 0.0
  %747 = vmatpush2.msra.mxu0 0.0
  %748 = vmatprep.subr.mxu0 0.0
  %749 = vmatpush2.msra.mxu0 0.0
  %750 = vmatprep.subr.mxu0 0.0
  %751 = vmatpush2.msra.mxu0 0.0
  %752 = vmatprep.subr.mxu0 0.0
  %753 = vmatpush2.msra.mxu0 0.0
  %754 = vmatprep.subr.mxu0 0.0
  %755 = vmatpush2.msra.mxu0 0.0
  %756 = vmatprep.subr.mxu0 0.0
  %757 = vmatpush2.msra.mxu0 0.0
  %758 = vmatprep.mubr.f32.mxu0 0.0
  %759 = vmatmul.mubr.f32.gmra.mxu0 %v692
  %v760 = vpop.f32.mrf.mxu0
  %v761 = vadd.f32 0.0, %v760
  %v762 = vpop.f32.mrf.mxu0
  %763 = vdwg.mxu0
  %v764 = vmul.f32 %v761, %v689
  %v765 = vmul.f32 %v690, %v690
  %v766 = vsub.f32 %v764, %v765
  %v767 = vmax.f32 %v766, 0.0
  %v768 = vld [vmem:[%s3] sm:$0x1]
  %v769 = vadd.f32 %v767, 1e-05
  %v770 = vrsqrt.pop %v769
  %v771 = vmul.f32 %v768, %v770
  %v772 = vld [vmem:[%s4] sm:$0x1]
  %v773 = vmul.f32 %v690, %v771
  %v774 = vsub.f32 %v772, %v773
  %v776 = vlaneseq
  %v777 = vshrl.u32 %v776, 7
  %v778 = vsub.s32 0, %v777
  %v779 = vrot.slane %v771, %v778
  %v781 = vmul.f32 %v300, %v779
  %v783 = vlaneseq
  %v784 = vshrl.u32 %v783, 7
  %v785 = vsub.s32 0, %v784
  %v786 = vrot.slane %v774, %v785
  %v788 = vadd.f32 %v781, %v786
  %v789 = vmax.f32 %v788, 0.0
  %790 = vst.msk [vmem:[%s6] sm:$0x7f] %vm301, %v789
  %v791 = vmul.f32 %v590, %v779
  %v792 = vadd.f32 %v791, %v786
  %v793 = vmax.f32 %v792, 0.0
  %s794 = scalar_lea.vmem %s6, 8
  %795 = vst.msk [vmem:[%s794] sm:$0x7f] %vm301, %v793
  // Predicated region
  $region26: #{downconv_forward.1} parent=0 // pred_check
    _
  $region27: #{downconv_forward.1} parent=0 // pred_check_branch
    %797 = sbr.rel (0) target = $region29
  $region28: #{downconv_forward.1} parent=0 // pred_region
    _
  $region29: #{downconv_forward.1} parent=0 // pred_fallthru
    _
  // Predicated region
  $region30: #{downconv_forward.1} parent=0 // pred_check
    _
  $region31: #{downconv_forward.1} parent=0 // pred_check_branch
    %799 = sbr.rel (0) target = $region33
  $region32: #{downconv_forward.1} parent=0 // pred_region
    _
  $region33: #{downconv_forward.1} parent=0 // pred_fallthru
    _

</llo_original>
